<compile_context>
chip_gen: v7x
topology: tpu7x:2x2x1
jax: 0.10.0
libtpu: 0.0.40
codegen_flags: <defaults>
</compile_context>

<pallas_src>
import math

import jax
import jax.numpy as jnp
from jax.experimental import pallas as pl
from jax.experimental.pallas import tpu as pltpu


def _round_up(x, m):
    return ((x + m - 1) // m) * m


def _pick_tile(dim, cap, small_align, big_align):
    """Pick a tile size for one dimension.

    If the whole (aligned) dim fits under `cap`, cover it with a single grid
    step (minimal padding, single pass).  Otherwise scan `big_align`-aligned
    candidates down from `cap` and keep the largest tile that minimizes
    padding waste.
    """
    if dim <= cap:
        return _round_up(dim, small_align)
    best, best_pad = cap, _round_up(dim, cap) - dim
    t = cap - big_align
    while t >= big_align:
        pad = _round_up(dim, t) - dim
        if pad < best_pad:
            best, best_pad = t, pad
        t -= big_align
    return best


def _maybe_pad2d(arr, rows, cols):
    r, c = arr.shape
    if r == rows and c == cols:
        return arr                      # no materialized copy when aligned
    return jnp.pad(arr, ((0, rows - r), (0, cols - c)))


def _make_fwgcn_kernel(has_bias, use_scratch):
    """Tiled matmul; f32 accumulation; scale/bias applied at finalize."""

    def kernel(adj_ref, x_ref, a_ref, *rest):
        idx = 0
        if has_bias:
            b_ref = rest[idx]
            idx += 1
        o_ref = rest[idx]
        idx += 1
        # For f32 outputs accumulate straight into the resident output block
        # (its index_map ignores k) -> no scratch, no final copy.
        acc_ref = rest[idx] if use_scratch else o_ref

        k = pl.program_id(2)

        partial = jnp.dot(
            adj_ref[...], x_ref[...], preferred_element_type=jnp.float32
        )

        @pl.when(k == 0)
        def _():
            # Assign on the first reduction step (saves a zero-store + vadd).
            acc_ref[...] = partial.astype(acc_ref.dtype)

        @pl.when(k > 0)
        def _():
            acc_ref[...] += partial.astype(acc_ref.dtype)

        @pl.when(k == pl.num_programs(2) - 1)
        def _():
            out = acc_ref[...].astype(jnp.float32) * a_ref[...]
            if has_bias:
                out = out + b_ref[...]
            o_ref[...] = out.astype(o_ref.dtype)

    return kernel


def fwgcn_forward(x, adj, a, bias=None, *, compute_dtype=None,
                  tm=None, tn=None, tk=None):
    """Feature-weighted GCN forward:  out = adj @ (x * a) [+ bias].

    x:    [N, F] node features
    adj:  [N, N] adjacency matrix
    a:    [F]    per-feature weights
    bias: [F] or None
    compute_dtype: optional dtype for adj/x inside the matmul (e.g. bf16);
                   accumulation and output stay float32-exact w.r.t. it.
    """
    n, f = x.shape
    assert adj.shape == (n, n), "adjacency must be square [N, N]"
    assert a.shape == (f,)

    out_dtype = x.dtype
    compute_dtype = jnp.dtype(compute_dtype) if compute_dtype else jnp.dtype(x.dtype)
    # Minimum sublane alignment depends on operand itemsize (f32: 8, bf16: 16).
    sub = {4: 8, 2: 16, 1: 32}.get(compute_dtype.itemsize, 8)

    # ---- tile selection --------------------------------------------------
    #  * tn covers all of F when F <= 512 -> adj read from HBM exactly once.
    #  * big tiles (tm<=512, tk<=1024) to amortize the ~0.35us/step overhead;
    #    multi-step paths use 256-aligned tiles for the 256x256 MXU.
    tm = tm or _pick_tile(n, 512, sub, 256)
    tk = tk or _pick_tile(n, 1024, 128, 256)
    tn = tn or _pick_tile(f, 512, 128, 256)

    m_pad = _round_up(n, tm)
    k_pad = _round_up(n, tk)
    f_pad = _round_up(f, tn)

    # ---- operands (conditional pad: zero-pad only when not tile-aligned) --
    adj_p = _maybe_pad2d(adj.astype(compute_dtype), m_pad, k_pad)
    x_p = _maybe_pad2d(x.astype(compute_dtype), k_pad, f_pad)
    a_p = _maybe_pad2d(a.astype(jnp.float32).reshape(1, f), 1, f_pad)

    in_specs = [
        pl.BlockSpec((tm, tk), lambda i, j, k: (i, k)),   # adj tile
        pl.BlockSpec((tk, tn), lambda i, j, k: (k, j)),   # x tile (unscaled)
        pl.BlockSpec((1, tn), lambda i, j, k: (0, j)),    # a slice (feature axis)
    ]
    operands = [adj_p, x_p, a_p]

    has_bias = bias is not None
    if has_bias:
        b_p = _maybe_pad2d(bias.astype(jnp.float32).reshape(1, f), 1, f_pad)
        in_specs.append(pl.BlockSpec((1, tn), lambda i, j, k: (0, j)))
        operands.append(b_p)

    use_scratch = jnp.dtype(out_dtype) != jnp.float32
    scratch_shapes = [pltpu.VMEM((tm, tn), jnp.float32)] if use_scratch else []

    grid = (m_pad // tm, f_pad // tn, k_pad // tk)

    # ---- cost estimate with true re-read factors ---------------------------
    cdt = compute_dtype.itemsize
    odt = jnp.dtype(out_dtype).itemsize
    i_steps, j_steps = m_pad // tm, f_pad // tn
    cost = pl.CostEstimate(
        flops=2 * m_pad * k_pad * f_pad,
        bytes_accessed=(m_pad * k_pad * cdt * j_steps     # adj re-read per j step
                        + k_pad * f_pad * cdt * i_steps   # x re-read per i step
                        + m_pad * f_pad * odt             # output
                        + f_pad * 4 * (2 if has_bias else 1)),
        transcendentals=0,
    )

    # ---- VMEM budget: double-buffered tiles + accumulator, with headroom;
    #      capped at 64 MiB so it is valid on v7x as well as v5e/v6e. --------
    vmem_est = (2 * (tm * tk + tk * tn) * cdt
                + 2 * tm * tn * odt
                + (tm * tn * 4 if use_scratch else 0)
                + 4 * tn * 4 * (2 if has_bias else 1))
    vmem_limit = int(min(max(2 * vmem_est, 32 * 1024 * 1024), 64 * 1024 * 1024))

    out_p = pl.pallas_call(
        _make_fwgcn_kernel(has_bias, use_scratch),
        out_shape=jax.ShapeDtypeStruct((m_pad, f_pad), out_dtype),
        grid_spec=pltpu.PrefetchScalarGridSpec(
            num_scalar_prefetch=0,
            grid=grid,
            in_specs=in_specs,
            out_specs=pl.BlockSpec((tm, tn), lambda i, j, k: (i, j)),
            scratch_shapes=scratch_shapes,
        ),
        compiler_params=pltpu.CompilerParams(
            dimension_semantics=("parallel", "parallel", "arbitrary"),
            vmem_limit_bytes=vmem_limit,
        ),
        cost_estimate=cost,
    )(*operands)

    if (m_pad, f_pad) != (n, f):
        return out_p[:n, :f]
    return out_p


if __name__ == "__main__":
    # Module config: no weight matrix, just a per-feature scale; bias=False
    # by default.  Small deterministic shapes.
    N = 16          # number of graph nodes
    F = 32          # in_features (== out_features)

    key = jax.random.PRNGKey(0)
    k_x, k_adj, k_a, k_b = jax.random.split(key, 4)

    x = jax.random.normal(k_x, (N, F), dtype=jnp.float32)
    adj = jax.random.uniform(k_adj, (N, N), dtype=jnp.float32)

    # reset_parameters: a ~ U(-stdv, stdv), stdv = 1/sqrt(in_features)
    stdv = 1.0 / math.sqrt(F)
    a = jax.random.uniform(k_a, (F,), minval=-stdv, maxval=stdv, dtype=jnp.float32)
    b = jax.random.uniform(k_b, (F,), minval=-stdv, maxval=stdv, dtype=jnp.float32)

    # --- no-bias path (PyTorch default) -------------------------------------
    out = jax.block_until_ready(fwgcn_forward(x, adj, a, bias=None))
    ref = adj @ (x * a)
    assert out.shape == (N, F)
    assert jnp.allclose(out, ref, atol=1e-5, rtol=1e-5), "mismatch (no bias)"

    # --- bias path -----------------------------------------------------------
    out_b = jax.block_until_ready(fwgcn_forward(x, adj, a, bias=b))
    ref_b = adj @ (x * a) + b
    assert jnp.allclose(out_b, ref_b, atol=1e-5, rtol=1e-5), "mismatch (bias)"

    # --- multi-tile grid sanity check (exercises k>0 accumulation and both
    #     parallel grid axes) with explicitly small tiles --------------------
    N2, F2 = 256, 256
    k1, k2, k3 = jax.random.split(jax.random.PRNGKey(1), 3)
    x2 = jax.random.normal(k1, (N2, F2), dtype=jnp.float32)
    adj2 = jax.random.uniform(k2, (N2, N2), dtype=jnp.float32)
    a2 = jax.random.uniform(k3, (F2,), minval=-1.0, maxval=1.0, dtype=jnp.float32)
    out2 = jax.block_until_ready(
        fwgcn_forward(x2, adj2, a2, tm=128, tn=128, tk=128))
    ref2 = jnp.matmul(adj2, x2 * a2, precision=jax.lax.Precision.HIGHEST)
    assert jnp.allclose(out2, ref2, atol=5e-3, rtol=5e-3), "mismatch (tiled)"

    print("KERNEL_OK")
</pallas_src>

<mosaic_0001>
module attributes {stable_mosaic.version = 11 : i64} {
  func.func @kernel(%arg0: i32, %arg1: i32, %arg2: i32, %arg3: memref<16x128xf32, #tpu.memory_space<vmem>>, %arg4: memref<128x128xf32, #tpu.memory_space<vmem>>, %arg5: memref<1x128xf32, #tpu.memory_space<vmem>>, %arg6: memref<16x128xf32, #tpu.memory_space<vmem>>) attributes {dimension_semantics = [#tpu.dimension_semantics<parallel>, #tpu.dimension_semantics<parallel>, #tpu.dimension_semantics<arbitrary>], iteration_bounds = array<i64: 1, 1, 1>, scalar_prefetch = 0 : i64, scratch_operands = 0 : i64, tpu.core_type = #tpu.core_type<tc>, window_params = [{transform_indices = @transform_0, window_bounds = array<i64: 16, 128>}, {transform_indices = @transform_1, window_bounds = array<i64: 128, 128>}, {transform_indices = @transform_2, window_bounds = array<i64: 1, 128>}, {transform_indices = @transform_3, window_bounds = array<i64: 16, 128>}]} {
    %c0 = arith.constant 0 : index
    %c0_0 = arith.constant 0 : index
    %0 = vector.load %arg3[%c0, %c0_0] : memref<16x128xf32, #tpu.memory_space<vmem>>, vector<16x128xf32>
    %c0_1 = arith.constant 0 : index
    %c0_2 = arith.constant 0 : index
    %1 = vector.load %arg4[%c0_1, %c0_2] : memref<128x128xf32, #tpu.memory_space<vmem>>, vector<128x128xf32>
    %cst = arith.constant dense<0.000000e+00> : vector<16x128xf32>
    %2 = tpu.matmul %0, %1, %cst {dimension_numbers = #tpu.dot_dimension_numbers<[1], [0], [0], [1], [0, 0, 1, 1], [], []>} : vector<16x128xf32>, vector<128x128xf32>, vector<16x128xf32> -> vector<16x128xf32>
    %c0_i32 = arith.constant 0 : i32
    %3 = arith.cmpi eq, %arg2, %c0_i32 : i32
    %4 = arith.extui %3 : i1 to i32
    %c0_i32_3 = arith.constant 0 : i32
    %5 = arith.cmpi ne, %4, %c0_i32_3 : i32
    scf.if %5 {
      %c0_8 = arith.constant 0 : index
      %c0_9 = arith.constant 0 : index
      %12 = vector.load %arg6[%c0_8, %c0_9] : memref<16x128xf32, #tpu.memory_space<vmem>>, vector<16x128xf32>
      tpu.vector_store %arg6[%c0_8, %c0_9], %2 {strides = array<i32>} : memref<16x128xf32, #tpu.memory_space<vmem>>, vector<16x128xf32>,
    } else {
    }
    %c0_i32_4 = arith.constant 0 : i32
    %6 = arith.cmpi sgt, %arg2, %c0_i32_4 : i32
    %7 = arith.extui %6 : i1 to i32
    %c0_i32_5 = arith.constant 0 : i32
    %8 = arith.cmpi ne, %7, %c0_i32_5 : i32
    scf.if %8 {
      %c0_8 = arith.constant 0 : index
      %c0_9 = arith.constant 0 : index
      %12 = vector.load %arg6[%c0_8, %c0_9] : memref<16x128xf32, #tpu.memory_space<vmem>>, vector<16x128xf32>
      %13 = arith.addf %12, %2 : vector<16x128xf32>
      %c0_10 = arith.constant 0 : index
      %c0_11 = arith.constant 0 : index
      %14 = vector.load %arg6[%c0_10, %c0_11] : memref<16x128xf32, #tpu.memory_space<vmem>>, vector<16x128xf32>
      tpu.vector_store %arg6[%c0_10, %c0_11], %13 {strides = array<i32>} : memref<16x128xf32, #tpu.memory_space<vmem>>, vector<16x128xf32>,
    } else {
    }
    %c0_i32_6 = arith.constant 0 : i32
    %9 = arith.cmpi eq, %arg2, %c0_i32_6 : i32
    %10 = arith.extui %9 : i1 to i32
    %c0_i32_7 = arith.constant 0 : i32
    %11 = arith.cmpi ne, %10, %c0_i32_7 : i32
    scf.if %11 {
      %c0_8 = arith.constant 0 : index
      %c0_9 = arith.constant 0 : index
      %12 = vector.load %arg6[%c0_8, %c0_9] : memref<16x128xf32, #tpu.memory_space<vmem>>, vector<16x128xf32>
      %c0_10 = arith.constant 0 : index
      %c0_11 = arith.constant 0 : index
      %13 = vector.load %arg5[%c0_10, %c0_11] : memref<1x128xf32, #tpu.memory_space<vmem>>, vector<1x128xf32>
      %14 = vector.broadcast %13 : vector<1x128xf32> to vector<16x128xf32>
      %15 = arith.mulf %12, %14 : vector<16x128xf32>
      %c0_12 = arith.constant 0 : index
      %c0_13 = arith.constant 0 : index
      %16 = vector.load %arg6[%c0_12, %c0_13] : memref<16x128xf32, #tpu.memory_space<vmem>>, vector<16x128xf32>
      tpu.vector_store %arg6[%c0_12, %c0_13], %15 {strides = array<i32>} : memref<16x128xf32, #tpu.memory_space<vmem>>, vector<16x128xf32>,
    } else {
    }
    return
  }
  func.func @transform_0(%arg0: i32, %arg1: i32, %arg2: i32) -> (i32, i32) {
    %c0_i32 = arith.constant 0 : i32
    return %arg0, %arg2 : i32, i32
  }
  func.func @transform_1(%arg0: i32, %arg1: i32, %arg2: i32) -> (i32, i32) {
    %c0_i32 = arith.constant 0 : i32
    return %arg2, %arg1 : i32, i32
  }
  func.func @transform_2(%arg0: i32, %arg1: i32, %arg2: i32) -> (i32, i32) {
    %c0_i32 = arith.constant 0 : i32
    %c0_i32_0 = arith.constant 0 : i32
    return %c0_i32, %arg1 : i32, i32
  }
  func.func @transform_3(%arg0: i32, %arg1: i32, %arg2: i32) -> (i32, i32) {
    %c0_i32 = arith.constant 0 : i32
    return %arg0, %arg1 : i32, i32
  }
}

</mosaic_0001>

<llo_original>
// kernel: tpu_custom_call.1
$region0: #{tpu_custom_call.1}
  #allocation0 [shape = 'u32[]', space=smem, size = 0x4, offset = 0x4, fixed_abs, tag = 'smem constant byte address 0x4 - core index']
  #allocation1 [shape = 'u32[144,128]{1,0:T(1,128)}', space=vmem, size = 0x12000, scoped, tag = 'internal scratch']
  %s0 = inlined_call_operand.hbm [shape: f32[16,128], index: 0, kind: input, shape index: {}]
  %s1 = inlined_call_operand.hbm [shape: f32[128,128], index: 1, kind: input, shape index: {}]
  %s2 = inlined_call_operand.vmem [shape: f32[1,128], index: 2, kind: input, shape index: {}]
  %s3 = inlined_call_operand.hbm [shape: f32[16,128], index: 3, kind: output, shape index: {}]
  %s4 = sld [smem:[#allocation0]]
  $region42: #{tpu_custom_call.1} parent=0
    _
  %s6 = ssub.s32 1, %s4
  %s7 = scalar_select 0, %s6, %s4
  $region1: #{tpu_custom_call.1} parent=0
    #allocation2 [shape = 'u8[8192]{0}', space=vmem, size = 0x2000, scoped, tag = 'input window, operand 0, single buffered']
    #allocation3 [shape = 's32[1]{0}', space=sflag, size = 0x4, scoped, tag = 'scoped memory for tpu_custom_call.1']
    #allocation4 [shape = 's32[1]{0}', space=sflag, size = 0x4, scoped, tag = 'scoped memory for tpu_custom_call.1']
    #allocation5 [shape = 'u8[65536]{0}', space=vmem, size = 0x10000, scoped, tag = 'input window, operand 1, single buffered']
    #allocation6 [shape = 's32[1]{0}', space=sflag, size = 0x4, scoped, tag = 'scoped memory for tpu_custom_call.1']
    #allocation7 [shape = 'u8[8192]{0}', space=vmem, size = 0x2000, scoped, tag = 'output window, operand 0, single buffered']
    %8 = vsyncpa [#allocation3], 0
    %9 = vsyncpa [#allocation6], 0
    %10 = vsyncpa [#allocation4], 0
    // Predicated region
    $region2: #{tpu_custom_call.1} parent=1 // pred_check
      _
    $region3: #{tpu_custom_call.1} parent=1 // pred_check_branch
      %12 = sbr.rel (0) target = $region5
    $region4: #{tpu_custom_call.1} parent=1 // pred_region
      %s14 = ssub.s32 256, 256
      %15 = vsyncadd [#allocation3], %s14
      %s16 = sshll.u32 [#allocation2], 4
      %s17 = int_to_ptr.vmem [resolvable:$true] %s16
      %22 = dma.hbm_to_vmem [thread:$0]  %s0, 256, %s17, [#allocation3], 128, 128, 8
    $region5: #{tpu_custom_call.1} parent=1 // pred_fallthru
      _
    // Predicated region
    $region6: #{tpu_custom_call.1} parent=1 // pred_check
      _
    $region7: #{tpu_custom_call.1} parent=1 // pred_check_branch
      %24 = sbr.rel (0) target = $region9
    $region8: #{tpu_custom_call.1} parent=1 // pred_region
      %s26 = ssub.s32 2048, 2048
      %27 = vsyncadd [#allocation6], %s26
      %s28 = sshll.u32 [#allocation5], 4
      %s29 = int_to_ptr.vmem [resolvable:$true] %s28
      %34 = dma.hbm_to_vmem [thread:$0]  %s1, 2048, %s29, [#allocation6], 128, 128, 8
    $region9: #{tpu_custom_call.1} parent=1 // pred_fallthru
      _
    // Predicated region
    $region10: #{tpu_custom_call.1} parent=1 // pred_check
      _
    $region11: #{tpu_custom_call.1} parent=1 // pred_check_branch
      %36 = sbr.rel (0) target = $region13
    $region12: #{tpu_custom_call.1} parent=1 // pred_region
      _
    $region13: #{tpu_custom_call.1} parent=1 // pred_fallthru
      _
    // Predicated region
    $region14: #{tpu_custom_call.1} parent=1 // pred_check
      _
    $region15: #{tpu_custom_call.1} parent=1 // pred_check_branch
      %38 = sbr.rel (0) target = $region17
    $region16: #{tpu_custom_call.1} parent=1 // pred_region
      %39 = dma.done [#allocation3], 256
    $region17: #{tpu_custom_call.1} parent=1 // pred_fallthru
      _
    // Predicated region
    $region18: #{tpu_custom_call.1} parent=1 // pred_check
      _
    $region19: #{tpu_custom_call.1} parent=1 // pred_check_branch
      %41 = sbr.rel (0) target = $region21
    $region20: #{tpu_custom_call.1} parent=1 // pred_region
      %42 = dma.done [#allocation6], 2048
    $region21: #{tpu_custom_call.1} parent=1 // pred_fallthru
      _
    %v43 = vld [vmem:[#allocation2] sm:$0xff]
    %v44 = vld [vmem:[#allocation2 + $0x8] sm:$0xff]
    %v45 = vld [vmem:[#allocation5] sm:$0xff]
    %v46 = vld [vmem:[#allocation5 + $0x8] sm:$0xff]
    %v47 = vld [vmem:[#allocation5 + $0x10] sm:$0xff]
    %v48 = vld [vmem:[#allocation5 + $0x18] sm:$0xff]
    %v49 = vld [vmem:[#allocation5 + $0x20] sm:$0xff]
    %v50 = vld [vmem:[#allocation5 + $0x28] sm:$0xff]
    %v51 = vld [vmem:[#allocation5 + $0x30] sm:$0xff]
    %v52 = vld [vmem:[#allocation5 + $0x38] sm:$0xff]
    %v53 = vld [vmem:[#allocation5 + $0x40] sm:$0xff]
    %v54 = vld [vmem:[#allocation5 + $0x48] sm:$0xff]
    %v55 = vld [vmem:[#allocation5 + $0x50] sm:$0xff]
    %v56 = vld [vmem:[#allocation5 + $0x58] sm:$0xff]
    %v57 = vld [vmem:[#allocation5 + $0x60] sm:$0xff]
    %v58 = vld [vmem:[#allocation5 + $0x68] sm:$0xff]
    %v59 = vld [vmem:[#allocation5 + $0x70] sm:$0xff]
    %v60 = vld [vmem:[#allocation5 + $0x78] sm:$0xff]
    %61 = vmatprep.subr.mxu0 0.0
    %62 = vmatpush1.msra.mxu0 %v45
    %63 = vmatprep.subr.mxu0 0.0
    %64 = vmatpush1.msra.mxu0 %v46
    %65 = vmatprep.subr.mxu0 0.0
    %66 = vmatpush1.msra.mxu0 %v47
    %67 = vmatprep.subr.mxu0 0.0
    %68 = vmatpush1.msra.mxu0 %v48
    %69 = vmatprep.subr.mxu0 0.0
    %70 = vmatpush1.msra.mxu0 %v49
    %71 = vmatprep.subr.mxu0 0.0
    %72 = vmatpush1.msra.mxu0 %v50
    %73 = vmatprep.subr.mxu0 0.0
    %74 = vmatpush1.msra.mxu0 %v51
    %75 = vmatprep.subr.mxu0 0.0
    %76 = vmatpush1.msra.mxu0 %v52
    %77 = vmatprep.subr.mxu0 0.0
    %78 = vmatpush1.msra.mxu0 %v53
    %79 = vmatprep.subr.mxu0 0.0
    %80 = vmatpush1.msra.mxu0 %v54
    %81 = vmatprep.subr.mxu0 0.0
    %82 = vmatpush1.msra.mxu0 %v55
    %83 = vmatprep.subr.mxu0 0.0
    %84 = vmatpush1.msra.mxu0 %v56
    %85 = vmatprep.subr.mxu0 0.0
    %86 = vmatpush1.msra.mxu0 %v57
    %87 = vmatprep.subr.mxu0 0.0
    %88 = vmatpush1.msra.mxu0 %v58
    %89 = vmatprep.subr.mxu0 0.0
    %90 = vmatpush1.msra.mxu0 %v59
    %91 = vmatprep.subr.mxu0 0.0
    %92 = vmatpush1.msra.mxu0 %v60
    %93 = vmatprep.subr.mxu0 0.0
    %94 = vmatpush1.msra.mxu0 0.0
    %95 = vmatprep.subr.mxu0 0.0
    %96 = vmatpush1.msra.mxu0 0.0
    %97 = vmatprep.subr.mxu0 0.0
    %98 = vmatpush1.msra.mxu0 0.0
    %99 = vmatprep.subr.mxu0 0.0
    %100 = vmatpush1.msra.mxu0 0.0
    %101 = vmatprep.subr.mxu0 0.0
    %102 = vmatpush1.msra.mxu0 0.0
    %103 = vmatprep.subr.mxu0 0.0
    %104 = vmatpush1.msra.mxu0 0.0
    %105 = vmatprep.subr.mxu0 0.0
    %106 = vmatpush1.msra.mxu0 0.0
    %107 = vmatprep.subr.mxu0 0.0
    %108 = vmatpush1.msra.mxu0 0.0
    %109 = vmatprep.subr.mxu0 0.0
    %110 = vmatpush1.msra.mxu0 0.0
    %111 = vmatprep.subr.mxu0 0.0
    %112 = vmatpush1.msra.mxu0 0.0
    %113 = vmatprep.subr.mxu0 0.0
    %114 = vmatpush1.msra.mxu0 0.0
    %115 = vmatprep.subr.mxu0 0.0
    %116 = vmatpush1.msra.mxu0 0.0
    %117 = vmatprep.subr.mxu0 0.0
    %118 = vmatpush1.msra.mxu0 0.0
    %119 = vmatprep.subr.mxu0 0.0
    %120 = vmatpush1.msra.mxu0 0.0
    %121 = vmatprep.subr.mxu0 0.0
    %122 = vmatpush1.msra.mxu0 0.0
    %123 = vmatprep.subr.mxu0 0.0
    %124 = vmatpush1.msra.mxu0 0.0
    %125 = vmatprep.mubr.f32.mxu0 0.0
    %126 = vmatmul.mubr.f32.gmra.mrb[0].mxu0 %v43
    %v127 = vpop.f32.mrb[0].mxu0
    %v128 = vadd.f32 0.0, %v127
    %v129 = vpop.f32.mrb[0].mxu0
    %130 = vmatprep.mubr.f32.mxu0 0.0
    %131 = vmatmul.mubr.f32.gmra.mrb[0].mxu0 %v44
    %v132 = vpop.f32.mrb[0].mxu0
    %v133 = vadd.f32 0.0, %v132
    %v134 = vpop.f32.mrb[0].mxu0
    %135 = vdwg.mxu0
    %p136 = scmp.eq.s32.totalorder 0, 0
    // Predicated region
    $region22: #{tpu_custom_call.1} parent=1 // pred_check
      %p137 = pneg %p136
    $region23: #{tpu_custom_call.1} parent=1 // pred_check_branch
      %139 = sbr.rel (%p137) target = $region25
    $region24: #{tpu_custom_call.1} parent=1 // pred_region
      %140 = vst [vmem:[#allocation7] sm:$0xff] %v128
      %141 = vst [vmem:[#allocation7 + $0x8] sm:$0xff] %v133
    $region25: #{tpu_custom_call.1} parent=1 // pred_fallthru
      _
    %p142 = scmp.gt.s32.totalorder 0, 0
    // Predicated region
    $region26: #{tpu_custom_call.1} parent=1 // pred_check
      %p143 = pneg %p142
    $region27: #{tpu_custom_call.1} parent=1 // pred_check_branch
      %145 = sbr.rel (%p143) target = $region29
    $region28: #{tpu_custom_call.1} parent=1 // pred_region
      %v146 = vld [vmem:[#allocation7] sm:$0xff]
      %v147 = vld [vmem:[#allocation7 + $0x8] sm:$0xff]
      %v148 = vadd.f32 %v146, %v128
      %v149 = vadd.f32 %v147, %v133
      %150 = vst [vmem:[#allocation7] sm:$0xff] %v148
      %151 = vst [vmem:[#allocation7 + $0x8] sm:$0xff] %v149
    $region29: #{tpu_custom_call.1} parent=1 // pred_fallthru
      _
    // Predicated region
    $region30: #{tpu_custom_call.1} parent=1 // pred_check
      %p152 = pneg %p136
    $region31: #{tpu_custom_call.1} parent=1 // pred_check_branch
      %154 = sbr.rel (%p152) target = $region33
    $region32: #{tpu_custom_call.1} parent=1 // pred_region
      %v155 = vld [vmem:[#allocation7] sm:$0xff]
      %v156 = vld [vmem:[#allocation7 + $0x8] sm:$0xff]
      %v157 = vld [vmem:[%s2] sm:$0x1]
      %v159 = vlaneseq
      %v160 = vshrl.u32 %v159, 7
      %v161 = vsub.s32 0, %v160
      %v162 = vrot.slane %v157, %v161
      %v164 = vmul.f32 %v155, %v162
      %v165 = vmul.f32 %v156, %v162
      %166 = vst [vmem:[#allocation7] sm:$0xff] %v164
      %167 = vst [vmem:[#allocation7 + $0x8] sm:$0xff] %v165
    $region33: #{tpu_custom_call.1} parent=1 // pred_fallthru
      _
    // Predicated region
    $region34: #{tpu_custom_call.1} parent=1 // pred_check
      _
    $region35: #{tpu_custom_call.1} parent=1 // pred_check_branch
      %169 = sbr.rel (0) target = $region37
    $region36: #{tpu_custom_call.1} parent=1 // pred_region
      %s171 = ssub.s32 256, 256
      %172 = vsyncadd [#allocation4], %s171
      %s173 = sshll.u32 [#allocation7], 4
      %s174 = int_to_ptr.vmem [resolvable:$true] %s173
      %179 = dma.vmem_to_hbm [thread:$0]  %s174, 256, %s3, [#allocation4], 128, 128, 8
    $region37: #{tpu_custom_call.1} parent=1 // pred_fallthru
      _
    // Predicated region
    $region38: #{tpu_custom_call.1} parent=1 // pred_check
      _
    $region39: #{tpu_custom_call.1} parent=1 // pred_check_branch
      %181 = sbr.rel (0) target = $region41
    $region40: #{tpu_custom_call.1} parent=1 // pred_region
      %182 = dma.done [#allocation4], 256
    $region41: #{tpu_custom_call.1} parent=1 // pred_fallthru
      _
    %183 = vsyncpa [#allocation3], 1
    %184 = vsyncpa [#allocation6], 1
    %185 = vsyncpa [#allocation4], 1

</llo_original>
